<compile_context>
chip_gen: v7x
topology: tpu7x:2x2x1
jax: 0.10.0
libtpu: 0.0.40
codegen_flags: <defaults>
</compile_context>

<pallas_src>
import math
import functools

import jax
import jax.numpy as jnp
from jax import lax
from jax.experimental import pallas as pl
from jax.experimental.pallas import tpu as pltpu


# ----------------------------------------------------------------------------
# Pallas kernel: LayerNorm with torch-style unbiased std
#   y = a_2 * (x - mean) / sqrt(std^2 + eps) + b_2,  std^2 = sum((x-mean)^2)/(D-1)
# ----------------------------------------------------------------------------
def _layernorm_kernel(x_ref, a_ref, b_ref, o_ref, *, eps, d):
    x = x_ref[...].astype(jnp.float32)                            # (TR, D)
    mean = jnp.sum(x, axis=-1, keepdims=True) * jnp.float32(1.0 / d)
    xc = x - mean
    var = jnp.sum(xc * xc, axis=-1, keepdims=True) * jnp.float32(1.0 / (d - 1))
    inv = lax.rsqrt(var + jnp.float32(eps))                       # EUP rsqrt
    y = xc * inv                                                  # (TR, D)
    y = a_ref[...].astype(jnp.float32) * y + b_ref[...].astype(jnp.float32)
    o_ref[...] = y.astype(o_ref.dtype)


def _choose_row_tile(n_rows: int, d: int, itemsize: int,
                     target_bytes: int = 2 * 1024 * 1024) -> int:
    """Rows per block: ~2 MiB tiles, 8-aligned, safe on v5e/v6e/v7x VMEM."""
    if n_rows <= 8:
        return n_rows                      # block == full array dims -> legal
    tr = max(8, min(n_rows, target_bytes // max(1, d * itemsize)))
    tr = (tr // 8) * 8
    return max(8, min(tr, n_rows))


@functools.partial(jax.jit, static_argnames=("eps",))
def layernorm_pallas(x, a_2, b_2, *, eps: float = 1e-6):
    """x: (..., D); a_2, b_2: (D,). Normalizes the last dim (torch semantics)."""
    orig_shape = x.shape
    D = orig_shape[-1]
    R = int(math.prod(orig_shape[:-1]))
    x2 = x.reshape(R, D)
    a2 = a_2.reshape(1, D)
    b2 = b_2.reshape(1, D)

    TR = _choose_row_tile(R, D, jnp.dtype(x.dtype).itemsize)
    grid = (pl.cdiv(R, TR),)

    out = pl.pallas_call(
        functools.partial(_layernorm_kernel, eps=float(eps), d=D),
        out_shape=jax.ShapeDtypeStruct((R, D), x.dtype),
        grid_spec=pltpu.PrefetchScalarGridSpec(
            num_scalar_prefetch=0,
            grid=grid,
            in_specs=[
                pl.BlockSpec((TR, D), lambda i: (i, 0)),      # x rows
                pl.BlockSpec((1, D), lambda i: (0, 0)),       # gamma (resident)
                pl.BlockSpec((1, D), lambda i: (0, 0)),       # beta  (resident)
            ],
            out_specs=pl.BlockSpec((TR, D), lambda i: (i, 0)),
        ),
        compiler_params=pltpu.CompilerParams(
            dimension_semantics=("parallel",),                # v7x megacore
            vmem_limit_bytes=64 * 1024 * 1024,
        ),
    )(x2, a2, b2)
    return out.reshape(orig_shape)


# ----------------------------------------------------------------------------
# Encoder forward: N layers then the Pallas LayerNorm
# ----------------------------------------------------------------------------
def encoder_forward(x, mask, layer_fns, a_2, b_2, *, eps: float = 1e-6):
    # TODO(synk): EncoderLayer internals (self-attn / FFN sublayers) are not
    # defined in the provided spec; `layer_fns` are opaque callables (x, mask)->x.
    for layer in layer_fns:
        x = layer(x, mask)
    return layernorm_pallas(x, a_2, b_2, eps=eps)


# ----------------------------------------------------------------------------
# Demo / correctness check
# ----------------------------------------------------------------------------
if __name__ == "__main__":
    B, S, D, N = 2, 8, 32, 2          # batch, seq, d_model, num layers
    eps = 1e-6

    key = jax.random.PRNGKey(0)
    k1, k2, k3 = jax.random.split(key, 3)
    x = jax.random.normal(k1, (B, S, D), dtype=jnp.float32)
    mask = jnp.ones((B, 1, S), dtype=jnp.float32)

    # LayerNorm parameters (module init is ones/zeros; perturb slightly so the
    # scale/shift path is actually exercised).
    a_2 = jnp.ones((D,), jnp.float32) + 0.1 * jax.random.normal(k2, (D,), jnp.float32)
    b_2 = 0.1 * jax.random.normal(k3, (D,), jnp.float32)

    # Placeholder encoder layers (identity) -- see TODO(synk) in encoder_forward.
    layer_fns = [(lambda h, m: h) for _ in range(N)]

    out = encoder_forward(x, mask, layer_fns, a_2, b_2, eps=eps)
    out = jax.block_until_ready(out)

    # Reference: identity layers, then LayerNorm exactly as written in torch
    # (unbiased std -> divide by D-1).
    h = x
    mean = h.mean(-1, keepdims=True)
    var = jnp.sum((h - mean) ** 2, axis=-1, keepdims=True) / (D - 1)
    ref = a_2 * (h - mean) / jnp.sqrt(var + eps) + b_2

    assert out.shape == (B, S, D)
    assert jnp.allclose(out, ref, atol=1e-5, rtol=1e-5), "mismatch vs reference"

    print("KERNEL_OK")
</pallas_src>

<mosaic_0001>
module attributes {stable_mosaic.version = 11 : i64} {
  func.func @_layernorm_kernel(%arg0: i32, %arg1: memref<16x32xf32, #tpu.memory_space<vmem>>, %arg2: memref<1x32xf32, #tpu.memory_space<vmem>>, %arg3: memref<1x32xf32, #tpu.memory_space<vmem>>, %arg4: memref<16x32xf32, #tpu.memory_space<vmem>>) attributes {dimension_semantics = [#tpu.dimension_semantics<parallel>], iteration_bounds = array<i64: 1>, scalar_prefetch = 0 : i64, scratch_operands = 0 : i64, tpu.core_type = #tpu.core_type<tc>, window_params = [{transform_indices = @transform_0, window_bounds = array<i64: 16, 32>}, {pipeline_mode = #tpu.pipeline_mode<synchronous>, transform_indices = @transform_1, window_bounds = array<i64: 1, 32>}, {pipeline_mode = #tpu.pipeline_mode<synchronous>, transform_indices = @transform_2, window_bounds = array<i64: 1, 32>}, {transform_indices = @transform_3, window_bounds = array<i64: 16, 32>}]} {
    %c0 = arith.constant 0 : index
    %c0_0 = arith.constant 0 : index
    %0 = vector.load %arg1[%c0, %c0_0] : memref<16x32xf32, #tpu.memory_space<vmem>>, vector<16x32xf32>
    %cst = arith.constant dense<0.000000e+00> : vector<16xf32>
    %1 = vector.multi_reduction <add>, %0, %cst [1] : vector<16x32xf32> to vector<16xf32>
    %2 = vector.shape_cast %1 : vector<16xf32> to vector<16x1xf32>
    %cst_1 = arith.constant 3.125000e-02 : f32
    %3 = vector.broadcast %cst_1 : f32 to vector<16x1xf32>
    %4 = arith.mulf %2, %3 : vector<16x1xf32>
    %5 = vector.broadcast %4 : vector<16x1xf32> to vector<16x32xf32>
    %6 = arith.subf %0, %5 : vector<16x32xf32>
    %7 = arith.mulf %6, %6 : vector<16x32xf32>
    %cst_2 = arith.constant dense<0.000000e+00> : vector<16xf32>
    %8 = vector.multi_reduction <add>, %7, %cst_2 [1] : vector<16x32xf32> to vector<16xf32>
    %9 = vector.shape_cast %8 : vector<16xf32> to vector<16x1xf32>
    %cst_3 = arith.constant 0.0322580636 : f32
    %10 = vector.broadcast %cst_3 : f32 to vector<16x1xf32>
    %11 = arith.mulf %9, %10 : vector<16x1xf32>
    %cst_4 = arith.constant 9.99999997E-7 : f32
    %12 = vector.broadcast %cst_4 : f32 to vector<16x1xf32>
    %13 = arith.addf %11, %12 : vector<16x1xf32>
    %14 = math.rsqrt %13 : vector<16x1xf32>
    %15 = vector.broadcast %14 : vector<16x1xf32> to vector<16x32xf32>
    %16 = arith.mulf %6, %15 : vector<16x32xf32>
    %c0_5 = arith.constant 0 : index
    %c0_6 = arith.constant 0 : index
    %17 = vector.load %arg2[%c0_5, %c0_6] : memref<1x32xf32, #tpu.memory_space<vmem>>, vector<1x32xf32>
    %18 = vector.broadcast %17 : vector<1x32xf32> to vector<16x32xf32>
    %19 = arith.mulf %18, %16 : vector<16x32xf32>
    %c0_7 = arith.constant 0 : index
    %c0_8 = arith.constant 0 : index
    %20 = vector.load %arg3[%c0_7, %c0_8] : memref<1x32xf32, #tpu.memory_space<vmem>>, vector<1x32xf32>
    %21 = vector.broadcast %20 : vector<1x32xf32> to vector<16x32xf32>
    %22 = arith.addf %19, %21 : vector<16x32xf32>
    %c0_9 = arith.constant 0 : index
    %c0_10 = arith.constant 0 : index
    %23 = vector.load %arg4[%c0_9, %c0_10] : memref<16x32xf32, #tpu.memory_space<vmem>>, vector<16x32xf32>
    tpu.vector_store %arg4[%c0_9, %c0_10], %22 {strides = array<i32>} : memref<16x32xf32, #tpu.memory_space<vmem>>, vector<16x32xf32>,
    return
  }
  func.func @transform_0(%arg0: i32) -> (i32, i32) {
    %c0_i32 = arith.constant 0 : i32
    %c0_i32_0 = arith.constant 0 : i32
    return %arg0, %c0_i32 : i32, i32
  }
  func.func @transform_1(%arg0: i32) -> (i32, i32) {
    %c0_i32 = arith.constant 0 : i32
    %c0_i32_0 = arith.constant 0 : i32
    %c0_i32_1 = arith.constant 0 : i32
    return %c0_i32, %c0_i32_0 : i32, i32
  }
  func.func @transform_2(%arg0: i32) -> (i32, i32) {
    %c0_i32 = arith.constant 0 : i32
    %c0_i32_0 = arith.constant 0 : i32
    %c0_i32_1 = arith.constant 0 : i32
    return %c0_i32, %c0_i32_0 : i32, i32
  }
  func.func @transform_3(%arg0: i32) -> (i32, i32) {
    %c0_i32 = arith.constant 0 : i32
    %c0_i32_0 = arith.constant 0 : i32
    return %arg0, %c0_i32 : i32, i32
  }
}

</mosaic_0001>

<llo_original>
// kernel: layernorm_pallas.1
$region0: #{layernorm_pallas.1}
  #allocation0 [shape = 'u32[]', space=smem, size = 0x4, offset = 0x4, fixed_abs, tag = 'smem constant byte address 0x4 - core index']
  #allocation1 [shape = 'u32[144,128]{1,0:T(1,128)}', space=vmem, size = 0x12000, scoped, tag = 'internal scratch']
  %s0 = inlined_call_operand.hbm [shape: f32[16,32], index: 0, kind: input, shape index: {}]
  %s1 = inlined_call_operand.hbm [shape: f32[1,32], index: 1, kind: input, shape index: {}]
  %s2 = inlined_call_operand.hbm [shape: f32[1,32], index: 2, kind: input, shape index: {}]
  %s3 = inlined_call_operand.hbm [shape: f32[16,32], index: 3, kind: output, shape index: {}]
  %s4 = sld [smem:[#allocation0]]
  $region34: #{layernorm_pallas.1} parent=0
    _
  %s6 = ssub.s32 1, %s4
  %s7 = scalar_select 0, %s6, %s4
  $region1: #{layernorm_pallas.1} parent=0
    #allocation2 [shape = 'u8[8192]{0}', space=vmem, size = 0x2000, scoped, tag = 'input window, operand 0, single buffered']
    #allocation3 [shape = 's32[1]{0}', space=sflag, size = 0x4, scoped, tag = 'scoped memory for layernorm_pallas.1']
    #allocation4 [shape = 's32[1]{0}', space=sflag, size = 0x4, scoped, tag = 'scoped memory for layernorm_pallas.1']
    #allocation5 [shape = 'u8[512]{0}', space=vmem, size = 0x400, scoped, tag = 'input window, operand 1, single buffered']
    #allocation6 [shape = 's32[1]{0}', space=sflag, size = 0x4, scoped, tag = 'scoped memory for layernorm_pallas.1']
    #allocation7 [shape = 'u8[512]{0}', space=vmem, size = 0x400, scoped, tag = 'input window, operand 2, single buffered']
    #allocation8 [shape = 'u8[8192]{0}', space=vmem, size = 0x2000, scoped, tag = 'output window, operand 0, single buffered']
    %8 = vsyncpa [#allocation3], 0
    %9 = vsyncpa [#allocation6], 0
    %10 = vsyncpa [#allocation4], 0
    // Predicated region
    $region2: #{layernorm_pallas.1} parent=1 // pred_check
      _
    $region3: #{layernorm_pallas.1} parent=1 // pred_check_branch
      %12 = sbr.rel (0) target = $region5
    $region4: #{layernorm_pallas.1} parent=1 // pred_region
      %s14 = ssub.s32 256, 256
      %15 = vsyncadd [#allocation3], %s14
      %s16 = sshll.u32 [#allocation2], 4
      %s17 = int_to_ptr.vmem [resolvable:$true] %s16
      %22 = dma.hbm_to_vmem [thread:$0]  %s0, 256, %s17, [#allocation3], 128, 128, 8
    $region5: #{layernorm_pallas.1} parent=1 // pred_fallthru
      _
    // Predicated region
    $region6: #{layernorm_pallas.1} parent=1 // pred_check
      _
    $region7: #{layernorm_pallas.1} parent=1 // pred_check_branch
      %24 = sbr.rel (0) target = $region9
    $region8: #{layernorm_pallas.1} parent=1 // pred_region
      %s26 = ssub.s32 16, 16
      %27 = vsyncadd [#allocation6], %s26
      %s29 = sshll.u32 [#allocation5], 4
      %s30 = int_to_ptr.vmem [resolvable:$true] %s29
      %32 = dma.hbm_to_vmem [thread:$0]  %s1, 16, %s30, [#allocation6]
    $region9: #{layernorm_pallas.1} parent=1 // pred_fallthru
      _
    // Predicated region
    $region10: #{layernorm_pallas.1} parent=1 // pred_check
      _
    $region11: #{layernorm_pallas.1} parent=1 // pred_check_branch
      %34 = sbr.rel (0) target = $region13
    $region12: #{layernorm_pallas.1} parent=1 // pred_region
      %s36 = ssub.s32 16, 16
      %37 = vsyncadd [#allocation6], %s36
      %s39 = sshll.u32 [#allocation7], 4
      %s40 = int_to_ptr.vmem [resolvable:$true] %s39
      %42 = dma.hbm_to_vmem [thread:$0]  %s2, 16, %s40, [#allocation6]
    $region13: #{layernorm_pallas.1} parent=1 // pred_fallthru
      _
    // Predicated region
    $region14: #{layernorm_pallas.1} parent=1 // pred_check
      _
    $region15: #{layernorm_pallas.1} parent=1 // pred_check_branch
      %44 = sbr.rel (0) target = $region17
    $region16: #{layernorm_pallas.1} parent=1 // pred_region
      %45 = dma.done [#allocation3], 256
    $region17: #{layernorm_pallas.1} parent=1 // pred_fallthru
      _
    // Predicated region
    $region18: #{layernorm_pallas.1} parent=1 // pred_check
      _
    $region19: #{layernorm_pallas.1} parent=1 // pred_check_branch
      %47 = sbr.rel (0) target = $region21
    $region20: #{layernorm_pallas.1} parent=1 // pred_region
      %48 = dma.done [#allocation6], 16
    $region21: #{layernorm_pallas.1} parent=1 // pred_fallthru
      _
    // Predicated region
    $region22: #{layernorm_pallas.1} parent=1 // pred_check
      _
    $region23: #{layernorm_pallas.1} parent=1 // pred_check_branch
      %50 = sbr.rel (0) target = $region25
    $region24: #{layernorm_pallas.1} parent=1 // pred_region
      %51 = dma.done [#allocation6], 16
    $region25: #{layernorm_pallas.1} parent=1 // pred_fallthru
      _
    %v52 = vld [vmem:[#allocation2] sm:$0xff]
    %v53 = vld [vmem:[#allocation2 + $0x8] sm:$0xff]
    %vm54 = vcmask 261120
    %v55 = vsel %vm54, %v52, 0.0
    %56 = vadd.xlane.f32.xlu0 %v55
    %v57 = vpop.xlane.xlu0 %56
    %v58 = vsel %vm54, %v53, 0.0
    %59 = vadd.xlane.f32.xlu0 %v58
    %v60 = vpop.xlane.xlu0 %59
    %v61 = vmul.f32 %v57, 0.03125
    %v62 = vmul.f32 %v60, 0.03125
    %v63 = vsub.f32 %v52, %v61
    %v64 = vsub.f32 %v53, %v62
    %v65 = vmul.f32 %v63, %v63
    %v66 = vmul.f32 %v64, %v64
    %v67 = vsel %vm54, %v65, 0.0
    %68 = vadd.xlane.f32.xlu0 %v67
    %v69 = vpop.xlane.xlu0 %68
    %v70 = vsel %vm54, %v66, 0.0
    %71 = vadd.xlane.f32.xlu0 %v70
    %v72 = vpop.xlane.xlu0 %71
    %v73 = vmul.f32 %v69, 0.032258064
    %v74 = vmul.f32 %v72, 0.032258064
    %v75 = vadd.f32 %v73, 1e-06
    %v76 = vadd.f32 %v74, 1e-06
    %v77 = vrsqrt.pop %v75
    %v78 = vrsqrt.pop %v76
    %v79 = vmul.f32 %v63, %v77
    %v80 = vmul.f32 %v64, %v78
    %v81 = vld [vmem:[#allocation5] sm:$0x1]
    %v83 = vlaneseq
    %v84 = vshrl.u32 %v83, 7
    %v85 = vsub.s32 0, %v84
    %v86 = vrot.slane %v81, %v85
    %v88 = vmul.f32 %v86, %v79
    %v89 = vmul.f32 %v86, %v80
    %v90 = vld [vmem:[#allocation7] sm:$0x1]
    %v92 = vlaneseq
    %v93 = vshrl.u32 %v92, 7
    %v94 = vsub.s32 0, %v93
    %v95 = vrot.slane %v90, %v94
    %v97 = vadd.f32 %v88, %v95
    %v98 = vadd.f32 %v89, %v95
    %99 = vst.msk [vmem:[#allocation8] sm:$0xff] %vm54, %v97
    %100 = vst.msk [vmem:[#allocation8 + $0x8] sm:$0xff] %vm54, %v98
    // Predicated region
    $region26: #{layernorm_pallas.1} parent=1 // pred_check
      _
    $region27: #{layernorm_pallas.1} parent=1 // pred_check_branch
      %102 = sbr.rel (0) target = $region29
    $region28: #{layernorm_pallas.1} parent=1 // pred_region
      %s104 = ssub.s32 256, 256
      %105 = vsyncadd [#allocation4], %s104
      %s106 = sshll.u32 [#allocation8], 4
      %s107 = int_to_ptr.vmem [resolvable:$true] %s106
      %112 = dma.vmem_to_hbm [thread:$0]  %s107, 256, %s3, [#allocation4], 128, 128, 8
    $region29: #{layernorm_pallas.1} parent=1 // pred_fallthru
      _
    // Predicated region
    $region30: #{layernorm_pallas.1} parent=1 // pred_check
      _
    $region31: #{layernorm_pallas.1} parent=1 // pred_check_branch
      %114 = sbr.rel (0) target = $region33
    $region32: #{layernorm_pallas.1} parent=1 // pred_region
      %115 = dma.done [#allocation4], 256
    $region33: #{layernorm_pallas.1} parent=1 // pred_fallthru
      _
    %116 = vsyncpa [#allocation3], 1
    %117 = vsyncpa [#allocation6], 1
    %118 = vsyncpa [#allocation4], 1

</llo_original>
